<compile_context>
chip_gen: v7x
topology: tpu7x:2x2x1
jax: 0.10.0
libtpu: 0.0.40
codegen_flags: <defaults>
</compile_context>

<pallas_src>
import functools

import jax
import jax.numpy as jnp
from jax import lax
from jax.experimental import pallas as pl
from jax.experimental.pallas import tpu as pltpu


def _lifted_structured_kernel(feat_ref, lab_col_ref, lab_row_ref, out_ref, *, margin):
    f = feat_ref[...]                                            # (N, D) f32
    n = f.shape[0]

    # pairwise euclidean distance: sqrt(|x_i|^2 + |x_j|^2 - 2 x_i . x_j)
    # dot_general contracts axis 1 of both operands -> f @ f.T directly on the
    # MXU, no explicit transpose of the (N, D) tile.
    sq = jnp.sum(f * f, axis=1, keepdims=True)                   # (N, 1)
    gram = lax.dot_general(
        f, f,
        dimension_numbers=(((1,), (1,)), ((), ())),
        preferred_element_type=jnp.float32,
    )                                                            # (N, N) MXU
    d2 = sq + sq.T - 2.0 * gram
    pd = jnp.sqrt(jnp.maximum(d2, 0.0))                          # (N, N)

    # label equality mask (broadcast compare of (N,1) column vs (1,N) row)
    lab_c = lab_col_ref[...]                                     # (N, 1) i32
    lab_r = lab_row_ref[...]                                     # (1, N) i32
    same = lab_c == lab_r                                        # (N, N) bool
    not_same = jnp.logical_not(same)

    # negative-pair term: exp(margin - d) on different-label pairs
    neg = jnp.exp(margin - pd) * not_same.astype(jnp.float32)    # (N, N)

    # positive mask: same label, excluding the diagonal. Diagonal test is a
    # broadcast compare of (N,1) vs (1,N) iota vectors (no (N,N) int temps).
    ri = lax.broadcasted_iota(jnp.int32, (n, 1), 0)
    ci = lax.broadcasted_iota(jnp.int32, (1, n), 1)
    pos_mask = jnp.logical_and(same, ri != ci).astype(jnp.float32)

    # row sums of the negative term; max(a,b) + min(a,b) == a + b
    row_sum = jnp.sum(neg, axis=1, keepdims=True)                # (N, 1)
    table = row_sum + row_sum.T                                  # (N, N)

    loss = (pd + jnp.log(table)) * pos_mask
    loss = jnp.square(jnp.maximum(loss, 0.0))

    # scalar result straight to SMEM
    out_ref[0, 0] = jnp.sum(loss) / jnp.sum(pos_mask)


def lifted_structured_loss(features, labels, margin=1.0):
    n, d = features.shape
    # Single-block kernel keeps ~10 live (N, N) f32 temporaries in VMEM; that
    # fits comfortably up to roughly N ~ 1K on v7x (64 MiB VMEM), more on
    # v5e/v6e.  Guard so large N fails loudly instead of OOMing silently.
    # TODO(synk): two-pass tiled grid for large N (pass 1: streaming (TM,TK)
    # tiles to compute row_sum; pass 2: masked loss tiles with row_sum
    # resident, row axis marked "parallel" for v7x's two TensorCores).
    assert n <= 1024, "single-block kernel: N too large for resident (N,N) temporaries"

    feat = features.astype(jnp.float32)
    lab = labels.astype(jnp.int32)
    lab_col = lab.reshape(n, 1)
    lab_row = lab.reshape(1, n)

    out = pl.pallas_call(
        functools.partial(_lifted_structured_kernel, margin=float(margin)),
        out_shape=jax.ShapeDtypeStruct((1, 1), jnp.float32),
        in_specs=[
            pl.BlockSpec(memory_space=pltpu.MemorySpace.VMEM),
            pl.BlockSpec(memory_space=pltpu.MemorySpace.VMEM),
            pl.BlockSpec(memory_space=pltpu.MemorySpace.VMEM),
        ],
        out_specs=pl.BlockSpec(memory_space=pltpu.MemorySpace.SMEM),
        compiler_params=pltpu.CompilerParams(vmem_limit_bytes=64 * 1024 * 1024),
    )(feat, lab_col, lab_row)
    return out[0, 0]


def _reference_loss(features, labels, margin=1.0):
    # plain-JAX reference mirroring the PyTorch module exactly
    f = features.astype(jnp.float32)
    sq = jnp.sum(f * f, axis=1, keepdims=True)
    pd = jnp.sqrt(jnp.maximum(sq + sq.T - 2.0 * (f @ f.T), 0.0))
    same = labels[None, :] == labels[:, None]
    neg = jnp.exp(margin - pd) * (~same).astype(jnp.float32)
    n = f.shape[0]
    pos_mask = jnp.logical_and(same, ~jnp.eye(n, dtype=bool)).astype(jnp.float32)
    row_sum = jnp.sum(neg, axis=1)
    table = row_sum[None, :] + row_sum[:, None]
    loss = (pd + jnp.log(table)) * pos_mask
    loss = jnp.square(jnp.maximum(loss, 0.0))
    return jnp.sum(loss) / jnp.sum(pos_mask)


if __name__ == "__main__":
    key = jax.random.PRNGKey(0)
    N, D = 8, 32
    features = jax.random.normal(key, (N, D), dtype=jnp.float32)
    labels = jnp.array([0, 1, 0, 1, 2, 2, 0, 1], dtype=jnp.int32)

    out = lifted_structured_loss(features, labels, margin=1.0)
    out = jax.block_until_ready(out)

    ref = _reference_loss(features, labels, margin=1.0)
    assert jnp.isfinite(out), "kernel produced non-finite loss"
    assert jnp.allclose(out, ref, rtol=1e-5, atol=1e-5), (out, ref)

    print("KERNEL_OK")
</pallas_src>

<mosaic_0001>
module attributes {stable_mosaic.version = 11 : i64} {
  func.func @_lifted_structured_kernel(%arg0: memref<8x32xf32, #tpu.memory_space<vmem>>, %arg1: memref<8x1xi32, #tpu.memory_space<vmem>>, %arg2: memref<1x8xi32, #tpu.memory_space<vmem>>, %arg3: memref<1x1xf32, #tpu.memory_space<smem>>) attributes {dimension_semantics = [], scalar_prefetch = 0 : i64, scratch_operands = 0 : i64, tpu.core_type = #tpu.core_type<tc>} {
    %c0 = arith.constant 0 : index
    %c0_0 = arith.constant 0 : index
    %0 = vector.load %arg0[%c0, %c0_0] : memref<8x32xf32, #tpu.memory_space<vmem>>, vector<8x32xf32>
    %1 = arith.mulf %0, %0 : vector<8x32xf32>
    %cst = arith.constant dense<0.000000e+00> : vector<8xf32>
    %2 = vector.multi_reduction <add>, %1, %cst [1] : vector<8x32xf32> to vector<8xf32>
    %3 = vector.shape_cast %2 : vector<8xf32> to vector<8x1xf32>
    %cst_1 = arith.constant dense<0.000000e+00> : vector<8x8xf32>
    %4 = tpu.matmul %0, %0, %cst_1 {dimension_numbers = #tpu.dot_dimension_numbers<[1], [1], [0], [0], [0, 0, 1, 0], [], []>} : vector<8x32xf32>, vector<8x32xf32>, vector<8x8xf32> -> vector<8x8xf32>
    %5 = tpu.transpose %3, [1, 0] : vector<8x1xf32> -> vector<1x8xf32>
    %6 = vector.broadcast %3 : vector<8x1xf32> to vector<8x8xf32>
    %7 = vector.broadcast %5 : vector<1x8xf32> to vector<8x8xf32>
    %8 = arith.addf %6, %7 : vector<8x8xf32>
    %cst_2 = arith.constant 2.000000e+00 : f32
    %9 = vector.broadcast %cst_2 : f32 to vector<8x8xf32>
    %10 = arith.mulf %9, %4 : vector<8x8xf32>
    %11 = arith.subf %8, %10 : vector<8x8xf32>
    %cst_3 = arith.constant 0.000000e+00 : f32
    %12 = vector.broadcast %cst_3 : f32 to vector<8x8xf32>
    %13 = arith.maximumf %11, %12 : vector<8x8xf32>
    %14 = math.sqrt %13 : vector<8x8xf32>
    %c0_4 = arith.constant 0 : index
    %c0_5 = arith.constant 0 : index
    %15 = vector.load %arg1[%c0_4, %c0_5] : memref<8x1xi32, #tpu.memory_space<vmem>>, vector<8x1xi32>
    %c0_6 = arith.constant 0 : index
    %c0_7 = arith.constant 0 : index
    %16 = vector.load %arg2[%c0_6, %c0_7] : memref<1x8xi32, #tpu.memory_space<vmem>>, vector<1x8xi32>
    %17 = vector.broadcast %15 : vector<8x1xi32> to vector<8x8xi32>
    %18 = vector.broadcast %16 : vector<1x8xi32> to vector<8x8xi32>
    %19 = arith.cmpi eq, %17, %18 : vector<8x8xi32>
    %cst_8 = arith.constant dense<true> : vector<8x8xi1>
    %20 = arith.xori %19, %cst_8 : vector<8x8xi1>
    %cst_9 = arith.constant 1.000000e+00 : f32
    %21 = vector.broadcast %cst_9 : f32 to vector<8x8xf32>
    %22 = arith.subf %21, %14 : vector<8x8xf32>
    %23 = math.exp %22 : vector<8x8xf32>
    %24 = arith.extui %20 : vector<8x8xi1> to vector<8x8xi32>
    %25 = arith.sitofp %24 : vector<8x8xi32> to vector<8x8xf32>
    %26 = arith.mulf %23, %25 : vector<8x8xf32>
    %27 = tpu.iota {dimensions = array<i32: 0>} : vector<8x1xi32>
    %28 = tpu.iota {dimensions = array<i32: 1>} : vector<1x8xi32>
    %29 = vector.broadcast %27 : vector<8x1xi32> to vector<8x8xi32>
    %30 = vector.broadcast %28 : vector<1x8xi32> to vector<8x8xi32>
    %31 = arith.cmpi ne, %29, %30 : vector<8x8xi32>
    %32 = arith.andi %19, %31 : vector<8x8xi1>
    %33 = arith.extui %32 : vector<8x8xi1> to vector<8x8xi32>
    %34 = arith.sitofp %33 : vector<8x8xi32> to vector<8x8xf32>
    %cst_10 = arith.constant dense<0.000000e+00> : vector<8xf32>
    %35 = vector.multi_reduction <add>, %26, %cst_10 [1] : vector<8x8xf32> to vector<8xf32>
    %36 = vector.shape_cast %35 : vector<8xf32> to vector<8x1xf32>
    %37 = tpu.transpose %36, [1, 0] : vector<8x1xf32> -> vector<1x8xf32>
    %38 = vector.broadcast %36 : vector<8x1xf32> to vector<8x8xf32>
    %39 = vector.broadcast %37 : vector<1x8xf32> to vector<8x8xf32>
    %40 = arith.addf %38, %39 : vector<8x8xf32>
    %41 = math.log %40 : vector<8x8xf32>
    %42 = arith.addf %14, %41 : vector<8x8xf32>
    %43 = arith.mulf %42, %34 : vector<8x8xf32>
    %cst_11 = arith.constant 0.000000e+00 : f32
    %44 = vector.broadcast %cst_11 : f32 to vector<8x8xf32>
    %45 = arith.maximumf %43, %44 : vector<8x8xf32>
    %46 = arith.mulf %45, %45 : vector<8x8xf32>
    %47 = vector.shape_cast %46 : vector<8x8xf32> to vector<1x8x8xf32>
    %cst_12 = arith.constant dense<0.000000e+00> : vector<1xf32>
    %48 = vector.multi_reduction <add>, %47, %cst_12 [1, 2] : vector<1x8x8xf32> to vector<1xf32>
    %49 = vector.shape_cast %48 : vector<1xf32> to vector<1x1x1xf32>
    %50 = vector.extract %49[0, 0, 0] : f32 from vector<1x1x1xf32>
    %51 = vector.shape_cast %34 : vector<8x8xf32> to vector<1x8x8xf32>
    %cst_13 = arith.constant dense<0.000000e+00> : vector<1xf32>
    %52 = vector.multi_reduction <add>, %51, %cst_13 [1, 2] : vector<1x8x8xf32> to vector<1xf32>
    %53 = vector.shape_cast %52 : vector<1xf32> to vector<1x1x1xf32>
    %54 = vector.extract %53[0, 0, 0] : f32 from vector<1x1x1xf32>
    %55 = arith.divf %50, %54 : f32
    %c0_14 = arith.constant 0 : index
    %c0_15 = arith.constant 0 : index
    %56 = memref.load %arg3[%c0_14, %c0_15] : memref<1x1xf32, #tpu.memory_space<smem>>
    memref.store %55, %arg3[%c0_14, %c0_15] : memref<1x1xf32, #tpu.memory_space<smem>>
    return
  }
}

</mosaic_0001>

<llo_original>
// kernel: tpu_custom_call.1
$region0: #{tpu_custom_call.1}
  #allocation0 [shape = 'u32[]', space=smem, size = 0x4, offset = 0x4, fixed_abs, tag = 'smem constant byte address 0x4 - core index']
  #allocation1 [shape = 'u32[144,128]{1,0:T(1,128)}', space=vmem, size = 0x12000, scoped, tag = 'internal scratch']
  %s0 = inlined_call_operand.hbm [shape: f32[8,32], index: 0, kind: input, shape index: {}]
  %s1 = inlined_call_operand.hbm [shape: s32[8,1], index: 1, kind: input, shape index: {}]
  %s2 = inlined_call_operand.hbm [shape: s32[1,8], index: 2, kind: input, shape index: {}]
  %s3 = inlined_call_operand.hbm [shape: f32[1,1], index: 3, kind: output, shape index: {}]
  %s4 = sld [smem:[#allocation0]]
  $region34: #{tpu_custom_call.1} parent=0
    _
  %s6 = ssub.s32 1, %s4
  %s7 = scalar_select 0, %s6, %s4
  $region1: #{tpu_custom_call.1} parent=0
    #allocation2 [shape = 'u8[4096]{0}', space=vmem, size = 0x1000, scoped, tag = 'input window, operand 0, single buffered']
    #allocation3 [shape = 's32[1]{0}', space=sflag, size = 0x4, scoped, tag = 'scoped memory for tpu_custom_call.1']
    #allocation4 [shape = 's32[1]{0}', space=sflag, size = 0x4, scoped, tag = 'scoped memory for tpu_custom_call.1']
    #allocation5 [shape = 'u8[4096]{0}', space=vmem, size = 0x1000, scoped, tag = 'input window, operand 1, single buffered']
    #allocation6 [shape = 's32[1]{0}', space=sflag, size = 0x4, scoped, tag = 'scoped memory for tpu_custom_call.1']
    #allocation7 [shape = 'u8[512]{0}', space=vmem, size = 0x400, scoped, tag = 'input window, operand 2, single buffered']
    #allocation8 [shape = 'u8[512]{0}', space=smem, size = 0x200, scoped, tag = 'output window, operand 0, single buffered']
    %8 = vsyncpa [#allocation3], 0
    %9 = vsyncpa [#allocation6], 0
    %10 = vsyncpa [#allocation4], 0
    // Predicated region
    $region2: #{tpu_custom_call.1} parent=1 // pred_check
      _
    $region3: #{tpu_custom_call.1} parent=1 // pred_check_branch
      %12 = sbr.rel (0) target = $region5
    $region4: #{tpu_custom_call.1} parent=1 // pred_region
      %s14 = ssub.s32 128, 128
      %15 = vsyncadd [#allocation3], %s14
      %s17 = sshll.u32 [#allocation2], 4
      %s18 = int_to_ptr.vmem [resolvable:$true] %s17
      %20 = dma.hbm_to_vmem [thread:$0]  %s0, 128, %s18, [#allocation3]
    $region5: #{tpu_custom_call.1} parent=1 // pred_fallthru
      _
    // Predicated region
    $region6: #{tpu_custom_call.1} parent=1 // pred_check
      _
    $region7: #{tpu_custom_call.1} parent=1 // pred_check_branch
      %22 = sbr.rel (0) target = $region9
    $region8: #{tpu_custom_call.1} parent=1 // pred_region
      %s24 = ssub.s32 128, 128
      %25 = vsyncadd [#allocation6], %s24
      %s27 = sshll.u32 [#allocation5], 4
      %s28 = int_to_ptr.vmem [resolvable:$true] %s27
      %30 = dma.hbm_to_vmem [thread:$0]  %s1, 128, %s28, [#allocation6]
    $region9: #{tpu_custom_call.1} parent=1 // pred_fallthru
      _
    // Predicated region
    $region10: #{tpu_custom_call.1} parent=1 // pred_check
      _
    $region11: #{tpu_custom_call.1} parent=1 // pred_check_branch
      %32 = sbr.rel (0) target = $region13
    $region12: #{tpu_custom_call.1} parent=1 // pred_region
      %s34 = ssub.s32 16, 16
      %35 = vsyncadd [#allocation6], %s34
      %s37 = sshll.u32 [#allocation7], 4
      %s38 = int_to_ptr.vmem [resolvable:$true] %s37
      %40 = dma.hbm_to_vmem [thread:$0]  %s2, 16, %s38, [#allocation6]
    $region13: #{tpu_custom_call.1} parent=1 // pred_fallthru
      _
    // Predicated region
    $region14: #{tpu_custom_call.1} parent=1 // pred_check
      _
    $region15: #{tpu_custom_call.1} parent=1 // pred_check_branch
      %42 = sbr.rel (0) target = $region17
    $region16: #{tpu_custom_call.1} parent=1 // pred_region
      %43 = dma.done [#allocation3], 128
    $region17: #{tpu_custom_call.1} parent=1 // pred_fallthru
      _
    // Predicated region
    $region18: #{tpu_custom_call.1} parent=1 // pred_check
      _
    $region19: #{tpu_custom_call.1} parent=1 // pred_check_branch
      %45 = sbr.rel (0) target = $region21
    $region20: #{tpu_custom_call.1} parent=1 // pred_region
      %46 = dma.done [#allocation6], 128
    $region21: #{tpu_custom_call.1} parent=1 // pred_fallthru
      _
    // Predicated region
    $region22: #{tpu_custom_call.1} parent=1 // pred_check
      _
    $region23: #{tpu_custom_call.1} parent=1 // pred_check_branch
      %48 = sbr.rel (0) target = $region25
    $region24: #{tpu_custom_call.1} parent=1 // pred_region
      %49 = dma.done [#allocation6], 16
    $region25: #{tpu_custom_call.1} parent=1 // pred_fallthru
      _
    %v50 = vld [vmem:[#allocation2] sm:$0xff]
    %v51 = vmul.f32 %v50, %v50
    %vm52 = vcmask 261120
    %v53 = vsel %vm52, %v51, 0.0
    %54 = vadd.xlane.f32.xlu0 %v53
    %v55 = vpop.xlane.xlu0 %54
    %v57 = vsel %vm52, %v50, 0
    %59 = vmatprep.subr.mxu0 0.0
    %60 = vmatpush1.xpose.msra.mxu0 %v57
    %61 = vmatprep.subr.mxu0 0.0
    %62 = vmatpush1.xpose.msra.mxu0 0.0
    %63 = vmatprep.subr.mxu0 0.0
    %64 = vmatpush1.xpose.msra.mxu0 0.0
    %65 = vmatprep.subr.mxu0 0.0
    %66 = vmatpush1.xpose.msra.mxu0 0.0
    %67 = vmatprep.subr.mxu0 0.0
    %68 = vmatpush1.xpose.msra.mxu0 0.0
    %69 = vmatprep.subr.mxu0 0.0
    %70 = vmatpush1.xpose.msra.mxu0 0.0
    %71 = vmatprep.subr.mxu0 0.0
    %72 = vmatpush1.xpose.msra.mxu0 0.0
    %73 = vmatprep.subr.mxu0 0.0
    %74 = vmatpush1.xpose.msra.mxu0 0.0
    %75 = vmatprep.subr.mxu0 0.0
    %76 = vmatpush1.xpose.msra.mxu0 0.0
    %77 = vmatprep.subr.mxu0 0.0
    %78 = vmatpush1.xpose.msra.mxu0 0.0
    %79 = vmatprep.subr.mxu0 0.0
    %80 = vmatpush1.xpose.msra.mxu0 0.0
    %81 = vmatprep.subr.mxu0 0.0
    %82 = vmatpush1.xpose.msra.mxu0 0.0
    %83 = vmatprep.subr.mxu0 0.0
    %84 = vmatpush1.xpose.msra.mxu0 0.0
    %85 = vmatprep.subr.mxu0 0.0
    %86 = vmatpush1.xpose.msra.mxu0 0.0
    %87 = vmatprep.subr.mxu0 0.0
    %88 = vmatpush1.xpose.msra.mxu0 0.0
    %89 = vmatprep.subr.mxu0 0.0
    %90 = vmatpush1.xpose.msra.mxu0 0.0
    %91 = vmatprep.subr.mxu0 0.0
    %92 = vmatpush1.xpose.msra.mxu0 0.0
    %93 = vmatprep.subr.mxu0 0.0
    %94 = vmatpush1.xpose.msra.mxu0 0.0
    %95 = vmatprep.subr.mxu0 0.0
    %96 = vmatpush1.xpose.msra.mxu0 0.0
    %97 = vmatprep.subr.mxu0 0.0
    %98 = vmatpush1.xpose.msra.mxu0 0.0
    %99 = vmatprep.subr.mxu0 0.0
    %100 = vmatpush1.xpose.msra.mxu0 0.0
    %101 = vmatprep.subr.mxu0 0.0
    %102 = vmatpush1.xpose.msra.mxu0 0.0
    %103 = vmatprep.subr.mxu0 0.0
    %104 = vmatpush1.xpose.msra.mxu0 0.0
    %105 = vmatprep.subr.mxu0 0.0
    %106 = vmatpush1.xpose.msra.mxu0 0.0
    %107 = vmatprep.subr.mxu0 0.0
    %108 = vmatpush1.xpose.msra.mxu0 0.0
    %109 = vmatprep.subr.mxu0 0.0
    %110 = vmatpush1.xpose.msra.mxu0 0.0
    %111 = vmatprep.subr.mxu0 0.0
    %112 = vmatpush1.xpose.msra.mxu0 0.0
    %113 = vmatprep.subr.mxu0 0.0
    %114 = vmatpush1.xpose.msra.mxu0 0.0
    %115 = vmatprep.subr.mxu0 0.0
    %116 = vmatpush1.xpose.msra.mxu0 0.0
    %117 = vmatprep.subr.mxu0 0.0
    %118 = vmatpush1.xpose.msra.mxu0 0.0
    %119 = vmatprep.subr.mxu0 0.0
    %120 = vmatpush1.xpose.msra.mxu0 0.0
    %121 = vmatprep.subr.mxu0 0.0
    %122 = vmatpush1.xpose.msra.mxu0 0.0
    %123 = vmatprep.mubr.f32.mxu0 0.0
    %124 = vmatmul.mubr.f32.gmra.mrb[0].mxu0 %v57
    %v125 = vpop.f32.mrb[0].mxu0
    %v126 = vadd.f32 0.0, %v125
    %v127 = vpop.f32.mrb[0].mxu0
    %128 = vdwg.mxu0
    %129 = vxpose.xlu0.b32.start [1/16] %v55, 128
    %130 = vxpose.xlu0.b32.cont [2/16] 0.0, 128
    %131 = vxpose.xlu0.b32.cont [3/16] 0.0, 128
    %132 = vxpose.xlu0.b32.cont [4/16] 0.0, 128
    %133 = vxpose.xlu0.b32.cont [5/16] 0.0, 128
    %134 = vxpose.xlu0.b32.cont [6/16] 0.0, 128
    %135 = vxpose.xlu0.b32.cont [7/16] 0.0, 128
    %136 = vxpose.xlu0.b32.cont [8/16] 0.0, 128
    %137 = vxpose.xlu0.b32.cont [9/16] 0.0, 128
    %138 = vxpose.xlu0.b32.cont [10/16] 0.0, 128
    %139 = vxpose.xlu0.b32.cont [11/16] 0.0, 128
    %140 = vxpose.xlu0.b32.cont [12/16] 0.0, 128
    %141 = vxpose.xlu0.b32.cont [13/16] 0.0, 128
    %142 = vxpose.xlu0.b32.cont [14/16] 0.0, 128
    %143 = vxpose.xlu0.b32.cont [15/16] 0.0, 128
    %144 = vxpose.xlu0.b32.end [16/16] 0.0, 128
    %v145 = vpop.trf.xlu0
    %v146 = vpop.trf.xlu0
    %v147 = vpop.trf.xlu0
    %v148 = vpop.trf.xlu0
    %v149 = vpop.trf.xlu0
    %v150 = vpop.trf.xlu0
    %v151 = vpop.trf.xlu0
    %v152 = vpop.trf.xlu0
    %v153 = vpop.trf.xlu0
    %v154 = vpop.trf.xlu0
    %v155 = vpop.trf.xlu0
    %v156 = vpop.trf.xlu0
    %v157 = vpop.trf.xlu0
    %v158 = vpop.trf.xlu0
    %v159 = vpop.trf.xlu0
    %v160 = vpop.trf.xlu0
    %v161 = vlaneseq
    %v162 = vshrl.u32 %v161, 7
    %v163 = vsub.s32 0, %v162
    %v164 = vrot.slane %v145, %v163
    %v165 = vadd.f32 %v55, %v164
    %v166 = vmul.f32 %v126, 2.0
    %v167 = vsub.f32 %v165, %v166
    %v168 = vmax.f32 %v167, 0.0
    %v169 = vrsqrt.pop %v168
    %v170 = vmul.f32 %v168, %v169
    %vm171 = vcmp.eq.f32.partialorder %v168, inf
    %v172 = vsel %vm171, %v168, %v170
    %vm173 = vcmp.eq.f32.partialorder %v168, 0.0
    %v174 = vand.u32 %v168, 2147483648
    %v175 = vsel %vm173, %v174, %v172
    %v176 = vld [vmem:[#allocation5] sm:$0xff]
    %v177 = vld [vmem:[#allocation7] sm:$0x1]
    %178 = vset.pattern.permute.xlu0 0
    %179 = vperm.xlu0 %178, %v176
    %v180 = vpop.permute.xlu0 %179
    %v181 = vlaneseq
    %v182 = vshrl.u32 %v181, 7
    %v183 = vsub.s32 0, %v182
    %v184 = vrot.slane %v177, %v183
    %vm185 = vcmp.eq.s32.totalorder %v180, %v184
    %vm186 = vmxor %vm185, 1
    %v187 = vsub.f32 1.0, %v175
    %v188 = vmul.f32 %v187, 1.442695
    %v189 = vpow.pop %v188
    %v190 = vsel %vm186, 1, 0
    %v191 = vcvt.s32.f32 %v190
    %v192 = vmul.f32 %v189, %v191
    %v193 = vlaneseq
    %v194 = vshrl.u32 %v193, 7
    %v195 = vlaneseq
    %v196 = vand.u32 %v195, 127
    %vm197 = vcmp.ne.s32.totalorder %v194, %v196
    %vm198 = vmand %vm185, %vm197
    %v199 = vsel %vm198, 1, 0
    %v200 = vcvt.s32.f32 %v199
    %vm201 = vcmask 64512
    %v202 = vsel %vm201, %v192, 0.0
    %203 = vadd.xlane.f32.xlu0 %v202
    %v204 = vpop.xlane.xlu0 %203
    %205 = vxpose.xlu0.b32.start [1/16] %v204, 128
    %206 = vxpose.xlu0.b32.cont [2/16] 0.0, 128
    %207 = vxpose.xlu0.b32.cont [3/16] 0.0, 128
    %208 = vxpose.xlu0.b32.cont [4/16] 0.0, 128
    %209 = vxpose.xlu0.b32.cont [5/16] 0.0, 128
    %210 = vxpose.xlu0.b32.cont [6/16] 0.0, 128
    %211 = vxpose.xlu0.b32.cont [7/16] 0.0, 128
    %212 = vxpose.xlu0.b32.cont [8/16] 0.0, 128
    %213 = vxpose.xlu0.b32.cont [9/16] 0.0, 128
    %214 = vxpose.xlu0.b32.cont [10/16] 0.0, 128
    %215 = vxpose.xlu0.b32.cont [11/16] 0.0, 128
    %216 = vxpose.xlu0.b32.cont [12/16] 0.0, 128
    %217 = vxpose.xlu0.b32.cont [13/16] 0.0, 128
    %218 = vxpose.xlu0.b32.cont [14/16] 0.0, 128
    %219 = vxpose.xlu0.b32.cont [15/16] 0.0, 128
    %220 = vxpose.xlu0.b32.end [16/16] 0.0, 128
    %v221 = vpop.trf.xlu0
    %v222 = vpop.trf.xlu0
    %v223 = vpop.trf.xlu0
    %v224 = vpop.trf.xlu0
    %v225 = vpop.trf.xlu0
    %v226 = vpop.trf.xlu0
    %v227 = vpop.trf.xlu0
    %v228 = vpop.trf.xlu0
    %v229 = vpop.trf.xlu0
    %v230 = vpop.trf.xlu0
    %v231 = vpop.trf.xlu0
    %v232 = vpop.trf.xlu0
    %v233 = vpop.trf.xlu0
    %v234 = vpop.trf.xlu0
    %v235 = vpop.trf.xlu0
    %v236 = vpop.trf.xlu0
    %v237 = vlaneseq
    %v238 = vshrl.u32 %v237, 7
    %v239 = vsub.s32 0, %v238
    %v240 = vrot.slane %v221, %v239
    %v241 = vadd.f32 %v204, %v240
    %v242 = vlog2.pop %v241
    %v243 = vmul.f32 %v242, 0.6931472
    %v244 = vadd.f32 %v175, %v243
    %v245 = vmul.f32 %v244, %v200
    %v246 = vmax.f32 %v245, 0.0
    %v247 = vmul.f32 %v246, %v246
    %v248 = vsel %vm201, %v247, 0.0
    %249 = vadd.xlane.f32.xlu0 %v248
    %v250 = vpop.xlane.xlu0 %249
    %v251 = vrot.slane %v250, 4
    %v252 = vadd.f32 %v250, %v251
    %v253 = vrot.slane %v252, 2
    %v254 = vadd.f32 %v252, %v253
    %v255 = vrot.slane %v254, 1
    %v256 = vadd.f32 %v254, %v255
    %s257 = vtos %v256
    %v258 = vsel %vm201, %v200, 0.0
    %259 = vadd.xlane.f32.xlu0 %v258
    %v260 = vpop.xlane.xlu0 %259
    %v261 = vrot.slane %v260, 4
    %v262 = vadd.f32 %v260, %v261
    %v263 = vrot.slane %v262, 2
    %v264 = vadd.f32 %v262, %v263
    %v265 = vrot.slane %v264, 1
    %v266 = vadd.f32 %v264, %v265
    %s267 = vtos %v266
    %v268 = vstv %s267
    %v269 = vrcp.pop %v268
    %s270 = vtos %v269
    %s271 = smul.f32 %s257, %s270
    %s272 = scalar_lea.smem [#allocation8], 0
    %273 = sst [smem:[%s272]] %s271
    // Predicated region
    $region26: #{tpu_custom_call.1} parent=1 // pred_check
      _
    $region27: #{tpu_custom_call.1} parent=1 // pred_check_branch
      %275 = sbr.rel (0) target = $region29
    $region28: #{tpu_custom_call.1} parent=1 // pred_region
      %s277 = ssub.s32 16, 16
      %278 = vsyncadd [#allocation4], %s277
      %281 = dma.smem_to_hbm [#allocation8], 16, %s3, [#allocation4]
    $region29: #{tpu_custom_call.1} parent=1 // pred_fallthru
      _
    // Predicated region
    $region30: #{tpu_custom_call.1} parent=1 // pred_check
      _
    $region31: #{tpu_custom_call.1} parent=1 // pred_check_branch
      %283 = sbr.rel (0) target = $region33
    $region32: #{tpu_custom_call.1} parent=1 // pred_region
      %284 = dma.done [#allocation4], 16
    $region33: #{tpu_custom_call.1} parent=1 // pred_fallthru
      _
    %285 = sfence
    %286 = vsyncpa [#allocation3], 1
    %287 = vsyncpa [#allocation6], 1
    %288 = vsyncpa [#allocation4], 1

</llo_original>
